<compile_context>
chip_gen: v7x
topology: tpu7x:2x2x1
jax: 0.10.0
libtpu: 0.0.40
codegen_flags: <defaults>
</compile_context>

<pallas_src>
import functools

import jax
import jax.numpy as jnp
from jax.experimental import pallas as pl
from jax.experimental.pallas import tpu as pltpu

INPUT_DIM = 24
HIDDEN = 256
N_EXPERTS = 15

# VMEM guard: per-row working set is ~1.9 KB (f32 h1/h2 intermediates +
# double-buffered x/out tiles), so 4096 rows is <8 MiB — well inside the
# explicit 32 MiB scoped limit on every generation (v7x physical = 64 MiB).
_MAX_TB = 4096
_VMEM_LIMIT_BYTES = 32 * 1024 * 1024


def _round_up(n, m):
    return ((n + m - 1) // m) * m


def _cdiv(a, b):
    return -(-a // b)


def _num_tensorcores():
    """Best-effort TensorCore count (v7x=2, v5e/v6e=1); fallback 1."""
    try:
        info = pltpu.get_tpu_info()
        for attr in ("num_cores", "core_count", "num_tensorcores",
                     "tensorcore_count", "num_cores_per_chip"):
            v = getattr(info, attr, None)
            if isinstance(v, int) and v > 0:
                return v
    except Exception:
        pass
    return 1


def _choose_tile(B, block_b, ncores):
    """Pick the batch tile (multiple of 16) and the grid step count."""
    tb = max(16, min(block_b, _MAX_TB, _round_up(B, 16)))
    tb = _round_up(tb, 16)
    if ncores > 1 and B >= 32:
        # Shard the single "parallel" axis evenly across TensorCores: force
        # the step count up to a multiple of ncores (an odd split leaves one
        # core idle part of the time on v7x).
        steps = max(ncores, _cdiv(B, tb))
        steps = _round_up(steps, ncores)
        tb = max(16, _round_up(_cdiv(B, steps), 16))
    steps = _cdiv(B, tb)
    if steps == 1:
        # Single block: block dim == array dim is always legal and avoids any
        # out-of-bounds rows for batches that aren't multiples of 16.
        tb = B
    return tb, steps


def _router_mlp_kernel(x_ref, w1_ref, b1_ref, w2_ref, b2_ref, w3_ref, b3_ref,
                       o_ref):
    # Cast f32 operands to bf16 in VMEM (cheap VPU work, never an HBM
    # pre-pass).  Biases and MXU accumulation stay f32.
    x = x_ref[...].astype(jnp.bfloat16)
    w1 = w1_ref[...].astype(jnp.bfloat16)
    w2 = w2_ref[...].astype(jnp.bfloat16)
    w3 = w3_ref[...].astype(jnp.bfloat16)

    # Layer 1: (TB, 24) @ (24, 256) + (1, 256), ReLU.
    h1 = jnp.dot(x, w1, preferred_element_type=jnp.float32)
    h1 = jnp.maximum(h1 + b1_ref[...], 0.0).astype(jnp.bfloat16)
    # Dropout(0.2): identity at inference.
    # Layer 2: (TB, 256) @ (256, 128) + (1, 128), ReLU.
    h2 = jnp.dot(h1, w2, preferred_element_type=jnp.float32)
    h2 = jnp.maximum(h2 + b2_ref[...], 0.0).astype(jnp.bfloat16)
    # Layer 3: (TB, 128) @ (128, 15) + (1, 15).
    out = jnp.dot(h2, w3, preferred_element_type=jnp.float32)
    o_ref[...] = (out + b3_ref[...]).astype(o_ref.dtype)


@functools.partial(jax.jit, static_argnames=("block_b",))
def router_mlp(x, w1, b1, w2, b2, w3, b3, *, block_b=1024):
    """x: (B, INPUT_DIM) float32 -> logits (B, N_EXPERTS) float32.

    block_b: max batch tile.  1024 is a good default on v6e/v7x; on v5e a
    sweep down to 256-512 may help (single vector-store slot).
    """
    B, in_dim = x.shape
    assert in_dim == w1.shape[0]
    h1d = w1.shape[1]
    h2d = w2.shape[1]
    out_dim = w3.shape[1]

    ncores = _num_tensorcores()
    tb, steps = _choose_tile(B, block_b, ncores)

    flops = 2 * B * (in_dim * h1d + h1d * h2d + h2d * out_dim)
    bytes_accessed = (
        B * in_dim * 4                                   # x (f32) streamed in
        + B * out_dim * 4                                # logits (f32) out
        + (in_dim * h1d + h1d * h2d + h2d * out_dim) * 4  # weights (f32, once)
        + (h1d + h2d + out_dim) * 4)                     # biases (f32)
    cost = pl.CostEstimate(flops=flops, transcendentals=0,
                           bytes_accessed=bytes_accessed)

    out = pl.pallas_call(
        _router_mlp_kernel,
        out_shape=jax.ShapeDtypeStruct((B, out_dim), jnp.float32),
        grid_spec=pltpu.PrefetchScalarGridSpec(
            num_scalar_prefetch=0,
            grid=(steps,),
            in_specs=[
                pl.BlockSpec((tb, in_dim), lambda i: (i, 0)),    # x tile
                pl.BlockSpec((in_dim, h1d), lambda i: (0, 0)),   # W1 (resident)
                pl.BlockSpec((1, h1d), lambda i: (0, 0)),        # b1
                pl.BlockSpec((h1d, h2d), lambda i: (0, 0)),      # W2 (resident)
                pl.BlockSpec((1, h2d), lambda i: (0, 0)),        # b2
                pl.BlockSpec((h2d, out_dim), lambda i: (0, 0)),  # W3 (resident)
                pl.BlockSpec((1, out_dim), lambda i: (0, 0)),    # b3
            ],
            out_specs=pl.BlockSpec((tb, out_dim), lambda i: (i, 0)),
        ),
        compiler_params=pltpu.CompilerParams(
            dimension_semantics=("parallel",),
            vmem_limit_bytes=_VMEM_LIMIT_BYTES),
        cost_estimate=cost,
    )(x, w1, b1, w2, b2, w3, b3)

    return out


def _xavier_uniform(key, fan_in, fan_out, dtype=jnp.float32):
    # Matches torch.nn.init.xavier_uniform_ (gain=1): U(-a, a),
    # a = sqrt(6 / (fan_in + fan_out)).  Stored as (in, out).
    limit = (6.0 / (fan_in + fan_out)) ** 0.5
    return jax.random.uniform(key, (fan_in, fan_out), dtype,
                              minval=-limit, maxval=limit)


def init_params(key):
    k1, k2, k3 = jax.random.split(key, 3)
    w1 = _xavier_uniform(k1, INPUT_DIM, HIDDEN)
    b1 = jnp.zeros((1, HIDDEN), jnp.float32)
    w2 = _xavier_uniform(k2, HIDDEN, HIDDEN // 2)
    b2 = jnp.zeros((1, HIDDEN // 2), jnp.float32)
    w3 = _xavier_uniform(k3, HIDDEN // 2, N_EXPERTS)
    b3 = jnp.zeros((1, N_EXPERTS), jnp.float32)
    return w1, b1, w2, b2, w3, b3


def reference_mlp_f32(x, w1, b1, w2, b2, w3, b3):
    h = jnp.maximum(x @ w1 + b1, 0.0)
    h = jnp.maximum(h @ w2 + b2, 0.0)
    return h @ w3 + b3


if __name__ == "__main__":
    key = jax.random.PRNGKey(0)
    kx, kp = jax.random.split(key)
    params = init_params(kp)

    # Test 1: small batch, single grid step.
    batch = 16
    x = jax.random.normal(kx, (batch, INPUT_DIM), jnp.float32)
    out = jax.block_until_ready(router_mlp(x, *params))
    ref = reference_mlp_f32(x, *params)
    assert out.shape == (batch, N_EXPERTS)
    # bf16 inputs / f32 accumulation: loose tolerance vs. f32 reference, but
    # expert ranking must be preserved.
    assert jnp.allclose(out, ref, atol=5e-2, rtol=5e-2), "mismatch vs reference"
    assert jnp.all(jnp.argmax(out, axis=-1) == jnp.argmax(ref, axis=-1)), \
        "top-1 expert selection changed under bf16"

    # Test 2: ragged batch + multi-step grid (exercises partial-block
    # writeback of the last tile — no wrapper-side padding of x).
    batch2 = 37
    x2 = jax.random.normal(jax.random.fold_in(kx, 1), (batch2, INPUT_DIM),
                           jnp.float32)
    out2 = jax.block_until_ready(router_mlp(x2, *params, block_b=16))
    ref2 = reference_mlp_f32(x2, *params)
    assert out2.shape == (batch2, N_EXPERTS)
    assert jnp.allclose(out2, ref2, atol=5e-2, rtol=5e-2), \
        "mismatch vs reference (ragged batch)"

    print("KERNEL_OK")
</pallas_src>

<mosaic_0001>
module attributes {stable_mosaic.version = 11 : i64} {
  func.func @_router_mlp_kernel(%arg0: i32, %arg1: memref<16x24xf32, #tpu.memory_space<vmem>>, %arg2: memref<24x256xf32, #tpu.memory_space<vmem>>, %arg3: memref<1x256xf32, #tpu.memory_space<vmem>>, %arg4: memref<256x128xf32, #tpu.memory_space<vmem>>, %arg5: memref<1x128xf32, #tpu.memory_space<vmem>>, %arg6: memref<128x15xf32, #tpu.memory_space<vmem>>, %arg7: memref<1x15xf32, #tpu.memory_space<vmem>>, %arg8: memref<16x15xf32, #tpu.memory_space<vmem>>) attributes {dimension_semantics = [#tpu.dimension_semantics<parallel>], iteration_bounds = array<i64: 1>, scalar_prefetch = 0 : i64, scratch_operands = 0 : i64, tpu.core_type = #tpu.core_type<tc>, window_params = [{transform_indices = @transform_0, window_bounds = array<i64: 16, 24>}, {pipeline_mode = #tpu.pipeline_mode<synchronous>, transform_indices = @transform_1, window_bounds = array<i64: 24, 256>}, {pipeline_mode = #tpu.pipeline_mode<synchronous>, transform_indices = @transform_2, window_bounds = array<i64: 1, 256>}, {pipeline_mode = #tpu.pipeline_mode<synchronous>, transform_indices = @transform_3, window_bounds = array<i64: 256, 128>}, {pipeline_mode = #tpu.pipeline_mode<synchronous>, transform_indices = @transform_4, window_bounds = array<i64: 1, 128>}, {pipeline_mode = #tpu.pipeline_mode<synchronous>, transform_indices = @transform_5, window_bounds = array<i64: 128, 15>}, {pipeline_mode = #tpu.pipeline_mode<synchronous>, transform_indices = @transform_6, window_bounds = array<i64: 1, 15>}, {transform_indices = @transform_7, window_bounds = array<i64: 16, 15>}]} {
    %c0 = arith.constant 0 : index
    %c0_0 = arith.constant 0 : index
    %0 = vector.load %arg1[%c0, %c0_0] : memref<16x24xf32, #tpu.memory_space<vmem>>, vector<16x24xf32>
    %1 = arith.truncf %0 : vector<16x24xf32> to vector<16x24xbf16>
    %c0_1 = arith.constant 0 : index
    %c0_2 = arith.constant 0 : index
    %2 = vector.load %arg2[%c0_1, %c0_2] : memref<24x256xf32, #tpu.memory_space<vmem>>, vector<24x256xf32>
    %3 = arith.truncf %2 : vector<24x256xf32> to vector<24x256xbf16>
    %c0_3 = arith.constant 0 : index
    %c0_4 = arith.constant 0 : index
    %4 = vector.load %arg4[%c0_3, %c0_4] : memref<256x128xf32, #tpu.memory_space<vmem>>, vector<256x128xf32>
    %5 = arith.truncf %4 : vector<256x128xf32> to vector<256x128xbf16>
    %c0_5 = arith.constant 0 : index
    %c0_6 = arith.constant 0 : index
    %6 = vector.load %arg6[%c0_5, %c0_6] : memref<128x15xf32, #tpu.memory_space<vmem>>, vector<128x15xf32>
    %7 = arith.truncf %6 : vector<128x15xf32> to vector<128x15xbf16>
    %cst = arith.constant dense<0.000000e+00> : vector<16x256xf32>
    %8 = tpu.matmul %1, %3, %cst {dimension_numbers = #tpu.dot_dimension_numbers<[1], [0], [0], [1], [0, 0, 1, 1], [], []>} : vector<16x24xbf16>, vector<24x256xbf16>, vector<16x256xf32> -> vector<16x256xf32>
    %c0_7 = arith.constant 0 : index
    %c0_8 = arith.constant 0 : index
    %9 = vector.load %arg3[%c0_7, %c0_8] : memref<1x256xf32, #tpu.memory_space<vmem>>, vector<1x256xf32>
    %10 = vector.broadcast %9 : vector<1x256xf32> to vector<16x256xf32>
    %11 = arith.addf %8, %10 : vector<16x256xf32>
    %cst_9 = arith.constant 0.000000e+00 : f32
    %12 = vector.broadcast %cst_9 : f32 to vector<16x256xf32>
    %13 = arith.maximumf %11, %12 : vector<16x256xf32>
    %14 = arith.truncf %13 : vector<16x256xf32> to vector<16x256xbf16>
    %cst_10 = arith.constant dense<0.000000e+00> : vector<16x128xf32>
    %15 = tpu.matmul %14, %5, %cst_10 {dimension_numbers = #tpu.dot_dimension_numbers<[1], [0], [0], [1], [0, 0, 1, 1], [], []>} : vector<16x256xbf16>, vector<256x128xbf16>, vector<16x128xf32> -> vector<16x128xf32>
    %c0_11 = arith.constant 0 : index
    %c0_12 = arith.constant 0 : index
    %16 = vector.load %arg5[%c0_11, %c0_12] : memref<1x128xf32, #tpu.memory_space<vmem>>, vector<1x128xf32>
    %17 = vector.broadcast %16 : vector<1x128xf32> to vector<16x128xf32>
    %18 = arith.addf %15, %17 : vector<16x128xf32>
    %cst_13 = arith.constant 0.000000e+00 : f32
    %19 = vector.broadcast %cst_13 : f32 to vector<16x128xf32>
    %20 = arith.maximumf %18, %19 : vector<16x128xf32>
    %21 = arith.truncf %20 : vector<16x128xf32> to vector<16x128xbf16>
    %cst_14 = arith.constant dense<0.000000e+00> : vector<16x15xf32>
    %22 = tpu.matmul %21, %7, %cst_14 {dimension_numbers = #tpu.dot_dimension_numbers<[1], [0], [0], [1], [0, 0, 1, 1], [], []>} : vector<16x128xbf16>, vector<128x15xbf16>, vector<16x15xf32> -> vector<16x15xf32>
    %c0_15 = arith.constant 0 : index
    %c0_16 = arith.constant 0 : index
    %23 = vector.load %arg7[%c0_15, %c0_16] : memref<1x15xf32, #tpu.memory_space<vmem>>, vector<1x15xf32>
    %24 = vector.broadcast %23 : vector<1x15xf32> to vector<16x15xf32>
    %25 = arith.addf %22, %24 : vector<16x15xf32>
    %c0_17 = arith.constant 0 : index
    %c0_18 = arith.constant 0 : index
    %26 = vector.load %arg8[%c0_17, %c0_18] : memref<16x15xf32, #tpu.memory_space<vmem>>, vector<16x15xf32>
    tpu.vector_store %arg8[%c0_17, %c0_18], %25 {strides = array<i32>} : memref<16x15xf32, #tpu.memory_space<vmem>>, vector<16x15xf32>,
    return
  }
  func.func @transform_0(%arg0: i32) -> (i32, i32) {
    %c0_i32 = arith.constant 0 : i32
    %c0_i32_0 = arith.constant 0 : i32
    return %arg0, %c0_i32 : i32, i32
  }
  func.func @transform_1(%arg0: i32) -> (i32, i32) {
    %c0_i32 = arith.constant 0 : i32
    %c0_i32_0 = arith.constant 0 : i32
    %c0_i32_1 = arith.constant 0 : i32
    return %c0_i32, %c0_i32_0 : i32, i32
  }
  func.func @transform_2(%arg0: i32) -> (i32, i32) {
    %c0_i32 = arith.constant 0 : i32
    %c0_i32_0 = arith.constant 0 : i32
    %c0_i32_1 = arith.constant 0 : i32
    return %c0_i32, %c0_i32_0 : i32, i32
  }
  func.func @transform_3(%arg0: i32) -> (i32, i32) {
    %c0_i32 = arith.constant 0 : i32
    %c0_i32_0 = arith.constant 0 : i32
    %c0_i32_1 = arith.constant 0 : i32
    return %c0_i32, %c0_i32_0 : i32, i32
  }
  func.func @transform_4(%arg0: i32) -> (i32, i32) {
    %c0_i32 = arith.constant 0 : i32
    %c0_i32_0 = arith.constant 0 : i32
    %c0_i32_1 = arith.constant 0 : i32
    return %c0_i32, %c0_i32_0 : i32, i32
  }
  func.func @transform_5(%arg0: i32) -> (i32, i32) {
    %c0_i32 = arith.constant 0 : i32
    %c0_i32_0 = arith.constant 0 : i32
    %c0_i32_1 = arith.constant 0 : i32
    return %c0_i32, %c0_i32_0 : i32, i32
  }
  func.func @transform_6(%arg0: i32) -> (i32, i32) {
    %c0_i32 = arith.constant 0 : i32
    %c0_i32_0 = arith.constant 0 : i32
    %c0_i32_1 = arith.constant 0 : i32
    return %c0_i32, %c0_i32_0 : i32, i32
  }
  func.func @transform_7(%arg0: i32) -> (i32, i32) {
    %c0_i32 = arith.constant 0 : i32
    %c0_i32_0 = arith.constant 0 : i32
    return %arg0, %c0_i32 : i32, i32
  }
}

</mosaic_0001>

<llo_original>
// kernel: router_mlp.1
$region0: #{router_mlp.1}
  #allocation0 [shape = 'u32[]', space=smem, size = 0x4, offset = 0x4, fixed_abs, tag = 'smem constant byte address 0x4 - core index']
  #allocation1 [shape = 'u32[144,128]{1,0:T(1,128)}', space=vmem, size = 0x12000, scoped, tag = 'internal scratch']
  %s0 = inlined_call_operand.vmem [shape: f32[16,24], index: 0, kind: input, shape index: {}]
  %s1 = inlined_call_operand.vmem [shape: f32[24,256], index: 1, kind: input, shape index: {}]
  %s2 = inlined_call_operand.vmem [shape: f32[1,256], index: 2, kind: input, shape index: {}]
  %s3 = inlined_call_operand.hbm [shape: f32[256,128], index: 3, kind: input, shape index: {}]
  %s4 = inlined_call_operand.vmem [shape: f32[1,128], index: 4, kind: input, shape index: {}]
  %s5 = inlined_call_operand.vmem [shape: f32[128,15], index: 5, kind: input, shape index: {}]
  %s6 = inlined_call_operand.vmem [shape: f32[1,15], index: 6, kind: input, shape index: {}]
  %s7 = inlined_call_operand.hbm [shape: f32[16,15], index: 7, kind: output, shape index: {}]
  %s8 = sld [smem:[#allocation0]]
  $region42: #{router_mlp.1} parent=0
    _
  %s10 = ssub.s32 1, %s8
  %s11 = scalar_select 0, %s10, %s8
  $region1: #{router_mlp.1} parent=0
    #allocation2 [shape = 'u8[131072]{0}', space=vmem, size = 0x20000, scoped, tag = 'input window, operand 3, single buffered']
    #allocation3 [shape = 's32[1]{0}', space=sflag, size = 0x4, scoped, tag = 'scoped memory for router_mlp.1']
    #allocation4 [shape = 's32[1]{0}', space=sflag, size = 0x4, scoped, tag = 'scoped memory for router_mlp.1']
    #allocation5 [shape = 'u8[8192]{0}', space=vmem, size = 0x2000, scoped, tag = 'output window, operand 0, single buffered']
    %12 = vsyncpa [#allocation3], 0
    %13 = vsyncpa [#allocation4], 0
    // Predicated region
    $region2: #{router_mlp.1} parent=1 // pred_check
      _
    $region3: #{router_mlp.1} parent=1 // pred_check_branch
      %15 = sbr.rel (0) target = $region5
    $region4: #{router_mlp.1} parent=1 // pred_region
      _
    $region5: #{router_mlp.1} parent=1 // pred_fallthru
      _
    // Predicated region
    $region6: #{router_mlp.1} parent=1 // pred_check
      _
    $region7: #{router_mlp.1} parent=1 // pred_check_branch
      %17 = sbr.rel (0) target = $region9
    $region8: #{router_mlp.1} parent=1 // pred_region
      _
    $region9: #{router_mlp.1} parent=1 // pred_fallthru
      _
    // Predicated region
    $region10: #{router_mlp.1} parent=1 // pred_check
      _
    $region11: #{router_mlp.1} parent=1 // pred_check_branch
      %19 = sbr.rel (0) target = $region13
    $region12: #{router_mlp.1} parent=1 // pred_region
      _
    $region13: #{router_mlp.1} parent=1 // pred_fallthru
      _
    // Predicated region
    $region14: #{router_mlp.1} parent=1 // pred_check
      _
    $region15: #{router_mlp.1} parent=1 // pred_check_branch
      %21 = sbr.rel (0) target = $region17
    $region16: #{router_mlp.1} parent=1 // pred_region
      %s23 = ssub.s32 4096, 4096
      %24 = vsyncadd [#allocation3], %s23
      %s25 = sshll.u32 [#allocation2], 4
      %s26 = int_to_ptr.vmem [resolvable:$true] %s25
      %31 = dma.hbm_to_vmem [thread:$0]  %s3, 4096, %s26, [#allocation3], 128, 128, 8
    $region17: #{router_mlp.1} parent=1 // pred_fallthru
      _
    // Predicated region
    $region18: #{router_mlp.1} parent=1 // pred_check
      _
    $region19: #{router_mlp.1} parent=1 // pred_check_branch
      %33 = sbr.rel (0) target = $region21
    $region20: #{router_mlp.1} parent=1 // pred_region
      _
    $region21: #{router_mlp.1} parent=1 // pred_fallthru
      _
    // Predicated region
    $region22: #{router_mlp.1} parent=1 // pred_check
      _
    $region23: #{router_mlp.1} parent=1 // pred_check_branch
      %35 = sbr.rel (0) target = $region25
    $region24: #{router_mlp.1} parent=1 // pred_region
      _
    $region25: #{router_mlp.1} parent=1 // pred_fallthru
      _
    // Predicated region
    $region26: #{router_mlp.1} parent=1 // pred_check
      _
    $region27: #{router_mlp.1} parent=1 // pred_check_branch
      %37 = sbr.rel (0) target = $region29
    $region28: #{router_mlp.1} parent=1 // pred_region
      _
    $region29: #{router_mlp.1} parent=1 // pred_fallthru
      _
    // Predicated region
    $region30: #{router_mlp.1} parent=1 // pred_check
      _
    $region31: #{router_mlp.1} parent=1 // pred_check_branch
      %39 = sbr.rel (0) target = $region33
    $region32: #{router_mlp.1} parent=1 // pred_region
      %40 = dma.done [#allocation3], 4096
    $region33: #{router_mlp.1} parent=1 // pred_fallthru
      _
    %v42 = vld [vmem:[%s0] sm:$0xff]
    %v43 = vld [vmem:[%s0 + $0x8] sm:$0xff]
    %v44 = vpack.c.bf16 %v43, %v42
    %v45 = vld [vmem:[%s1] sm:$0xff]
    %v46 = vld [vmem:[%s1 + $0x8] sm:$0xff]
    %v47 = vld [vmem:[%s1 + $0x10] sm:$0xff]
    %v48 = vld [vmem:[%s1 + $0x18] sm:$0xff]
    %v49 = vld [vmem:[%s1 + $0x20] sm:$0xff]
    %v50 = vld [vmem:[%s1 + $0x28] sm:$0xff]
    %v51 = vpack.c.bf16 %v47, %v45
    %v52 = vpack.c.bf16 %v48, %v46
    %v53 = vpack.c.bf16 %v49, %v49
    %v54 = vpack.c.bf16 %v50, %v50
    %v55 = vld [vmem:[#allocation2] sm:$0xff]
    %v56 = vld [vmem:[#allocation2 + $0x8] sm:$0xff]
    %v57 = vld [vmem:[#allocation2 + $0x10] sm:$0xff]
    %v58 = vld [vmem:[#allocation2 + $0x18] sm:$0xff]
    %v59 = vld [vmem:[#allocation2 + $0x20] sm:$0xff]
    %v60 = vld [vmem:[#allocation2 + $0x28] sm:$0xff]
    %v61 = vld [vmem:[#allocation2 + $0x30] sm:$0xff]
    %v62 = vld [vmem:[#allocation2 + $0x38] sm:$0xff]
    %v63 = vld [vmem:[#allocation2 + $0x40] sm:$0xff]
    %v64 = vld [vmem:[#allocation2 + $0x48] sm:$0xff]
    %v65 = vld [vmem:[#allocation2 + $0x50] sm:$0xff]
    %v66 = vld [vmem:[#allocation2 + $0x58] sm:$0xff]
    %v67 = vld [vmem:[#allocation2 + $0x60] sm:$0xff]
    %v68 = vld [vmem:[#allocation2 + $0x68] sm:$0xff]
    %v69 = vld [vmem:[#allocation2 + $0x70] sm:$0xff]
    %v70 = vld [vmem:[#allocation2 + $0x78] sm:$0xff]
    %v71 = vld [vmem:[#allocation2 + $0x80] sm:$0xff]
    %v72 = vld [vmem:[#allocation2 + $0x88] sm:$0xff]
    %v73 = vld [vmem:[#allocation2 + $0x90] sm:$0xff]
    %v74 = vld [vmem:[#allocation2 + $0x98] sm:$0xff]
    %v75 = vld [vmem:[#allocation2 + $0xa0] sm:$0xff]
    %v76 = vld [vmem:[#allocation2 + $0xa8] sm:$0xff]
    %v77 = vld [vmem:[#allocation2 + $0xb0] sm:$0xff]
    %v78 = vld [vmem:[#allocation2 + $0xb8] sm:$0xff]
    %v79 = vld [vmem:[#allocation2 + $0xc0] sm:$0xff]
    %v80 = vld [vmem:[#allocation2 + $0xc8] sm:$0xff]
    %v81 = vld [vmem:[#allocation2 + $0xd0] sm:$0xff]
    %v82 = vld [vmem:[#allocation2 + $0xd8] sm:$0xff]
    %v83 = vld [vmem:[#allocation2 + $0xe0] sm:$0xff]
    %v84 = vld [vmem:[#allocation2 + $0xe8] sm:$0xff]
    %v85 = vld [vmem:[#allocation2 + $0xf0] sm:$0xff]
    %v86 = vld [vmem:[#allocation2 + $0xf8] sm:$0xff]
    %v87 = vpack.c.bf16 %v56, %v55
    %v88 = vpack.c.bf16 %v58, %v57
    %v89 = vpack.c.bf16 %v60, %v59
    %v90 = vpack.c.bf16 %v62, %v61
    %v91 = vpack.c.bf16 %v64, %v63
    %v92 = vpack.c.bf16 %v66, %v65
    %v93 = vpack.c.bf16 %v68, %v67
    %v94 = vpack.c.bf16 %v70, %v69
    %v95 = vpack.c.bf16 %v72, %v71
    %v96 = vpack.c.bf16 %v74, %v73
    %v97 = vpack.c.bf16 %v76, %v75
    %v98 = vpack.c.bf16 %v78, %v77
    %v99 = vpack.c.bf16 %v80, %v79
    %v100 = vpack.c.bf16 %v82, %v81
    %v101 = vpack.c.bf16 %v84, %v83
    %v102 = vpack.c.bf16 %v86, %v85
    %v103 = vld [vmem:[%s5] sm:$0xff]
    %v104 = vld [vmem:[%s5 + $0x8] sm:$0xff]
    %v105 = vld [vmem:[%s5 + $0x10] sm:$0xff]
    %v106 = vld [vmem:[%s5 + $0x18] sm:$0xff]
    %v107 = vld [vmem:[%s5 + $0x20] sm:$0xff]
    %v108 = vld [vmem:[%s5 + $0x28] sm:$0xff]
    %v109 = vld [vmem:[%s5 + $0x30] sm:$0xff]
    %v110 = vld [vmem:[%s5 + $0x38] sm:$0xff]
    %v111 = vld [vmem:[%s5 + $0x40] sm:$0xff]
    %v112 = vld [vmem:[%s5 + $0x48] sm:$0xff]
    %v113 = vld [vmem:[%s5 + $0x50] sm:$0xff]
    %v114 = vld [vmem:[%s5 + $0x58] sm:$0xff]
    %v115 = vld [vmem:[%s5 + $0x60] sm:$0xff]
    %v116 = vld [vmem:[%s5 + $0x68] sm:$0xff]
    %v117 = vld [vmem:[%s5 + $0x70] sm:$0xff]
    %v118 = vld [vmem:[%s5 + $0x78] sm:$0xff]
    %v119 = vpack.c.bf16 %v104, %v103
    %v120 = vpack.c.bf16 %v106, %v105
    %v121 = vpack.c.bf16 %v108, %v107
    %v122 = vpack.c.bf16 %v110, %v109
    %v123 = vpack.c.bf16 %v112, %v111
    %v124 = vpack.c.bf16 %v114, %v113
    %v125 = vpack.c.bf16 %v116, %v115
    %v126 = vpack.c.bf16 %v118, %v117
    %v127 = vld [vmem:[%s2] sm:$0x3]
    %v129 = vlaneseq
    %v130 = vshrl.u32 %v129, 7
    %v131 = vsub.s32 0, %v130
    %v132 = vrot.slane %v127, %v131
    %v133 = vlaneseq
    %v134 = vshrl.u32 %v133, 7
    %v135 = vsub.s32 1, %v134
    %v136 = vrot.slane %v127, %v135
    %vm139 = vcmask 195584
    %v141 = vsel %vm139, %v44, 0
    %vm143 = vcmask 1043456
    %v145 = vsel %vm143, %v53, 0
    %v148 = vsel %vm143, %v54, 0
    %150 = vmatprep.subr.bf16.mxu0 %v52
    %151 = vmatpush1.bf16.msra.mxu0 %v51
    %152 = vmatprep.subr.bf16.mxu0 %v148
    %153 = vmatpush1.bf16.msra.mxu0 %v145
    %154 = vmatprep.subr.bf16.mxu0 0
    %155 = vmatpush1.bf16.msra.mxu0 0
    %156 = vmatprep.subr.bf16.mxu0 0
    %157 = vmatpush1.bf16.msra.mxu0 0
    %158 = vmatprep.subr.bf16.mxu0 0
    %159 = vmatpush1.bf16.msra.mxu0 0
    %160 = vmatprep.subr.bf16.mxu0 0
    %161 = vmatpush1.bf16.msra.mxu0 0
    %162 = vmatprep.subr.bf16.mxu0 0
    %163 = vmatpush1.bf16.msra.mxu0 0
    %164 = vmatprep.subr.bf16.mxu0 0
    %165 = vmatpush1.bf16.msra.mxu0 0
    %166 = vmatprep.subr.bf16.mxu0 0
    %167 = vmatpush1.bf16.msra.mxu0 0
    %168 = vmatprep.subr.bf16.mxu0 0
    %169 = vmatpush1.bf16.msra.mxu0 0
    %170 = vmatprep.subr.bf16.mxu0 0
    %171 = vmatpush1.bf16.msra.mxu0 0
    %172 = vmatprep.subr.bf16.mxu0 0
    %173 = vmatpush1.bf16.msra.mxu0 0
    %174 = vmatprep.subr.bf16.mxu0 0
    %175 = vmatpush1.bf16.msra.mxu0 0
    %176 = vmatprep.subr.bf16.mxu0 0
    %177 = vmatpush1.bf16.msra.mxu0 0
    %178 = vmatprep.subr.bf16.mxu0 0
    %179 = vmatpush1.bf16.msra.mxu0 0
    %180 = vmatprep.subr.bf16.mxu0 0
    %181 = vmatpush1.bf16.msra.mxu0 0
    %182 = vmatprep.mubr.bf16.mxu0 0
    %183 = vmatmul.mubr.bf16.gmra.mrb[0].mxu0 %v141
    %v184 = vpop.f32.mrb[0].mxu0
    %v185 = vadd.f32 %v132, %v184
    %v186 = vpop.f32.mrb[0].mxu0
    %v187 = vadd.f32 %v136, %v186
    %v188 = vpop.f32.mrb[0].mxu0
    %v189 = vadd.f32 %v132, %v188
    %v190 = vpop.f32.mrb[0].mxu0
    %v191 = vadd.f32 %v136, %v190
    %192 = vdwg.mxu0
    %v193 = vmax.f32 %v185, 0.0
    %v194 = vmax.f32 %v187, 0.0
    %v195 = vmax.f32 %v189, 0.0
    %v196 = vmax.f32 %v191, 0.0
    %v197 = vpack.c.bf16 %v195, %v193
    %v198 = vpack.c.bf16 %v196, %v194
    %v199 = vld [vmem:[%s4] sm:$0x1]
    %v201 = vlaneseq
    %v202 = vshrl.u32 %v201, 7
    %v203 = vsub.s32 0, %v202
    %v204 = vrot.slane %v199, %v203
    %206 = vmatprep.subr.bf16.mxu0 0
    %207 = vmatpush1.bf16.msra.mxu0 %v87
    %208 = vmatprep.subr.bf16.mxu0 0
    %209 = vmatpush1.bf16.msra.mxu0 %v88
    %210 = vmatprep.subr.bf16.mxu0 0
    %211 = vmatpush1.bf16.msra.mxu0 %v89
    %212 = vmatprep.subr.bf16.mxu0 0
    %213 = vmatpush1.bf16.msra.mxu0 %v90
    %214 = vmatprep.subr.bf16.mxu0 0
    %215 = vmatpush1.bf16.msra.mxu0 %v91
    %216 = vmatprep.subr.bf16.mxu0 0
    %217 = vmatpush1.bf16.msra.mxu0 %v92
    %218 = vmatprep.subr.bf16.mxu0 0
    %219 = vmatpush1.bf16.msra.mxu0 %v93
    %220 = vmatprep.subr.bf16.mxu0 0
    %221 = vmatpush1.bf16.msra.mxu0 %v94
    %222 = vmatprep.subr.bf16.mxu0 0
    %223 = vmatpush1.bf16.msra.mxu0 %v95
    %224 = vmatprep.subr.bf16.mxu0 0
    %225 = vmatpush1.bf16.msra.mxu0 %v96
    %226 = vmatprep.subr.bf16.mxu0 0
    %227 = vmatpush1.bf16.msra.mxu0 %v97
    %228 = vmatprep.subr.bf16.mxu0 0
    %229 = vmatpush1.bf16.msra.mxu0 %v98
    %230 = vmatprep.subr.bf16.mxu0 0
    %231 = vmatpush1.bf16.msra.mxu0 %v99
    %232 = vmatprep.subr.bf16.mxu0 0
    %233 = vmatpush1.bf16.msra.mxu0 %v100
    %234 = vmatprep.subr.bf16.mxu0 0
    %235 = vmatpush1.bf16.msra.mxu0 %v101
    %236 = vmatprep.subr.bf16.mxu0 0
    %237 = vmatpush1.bf16.msra.mxu0 %v102
    %238 = vmatprep.mubr.bf16.mxu0 %v198
    %239 = vmatmul.mubr.bf16.gmra.mrb[0].mxu0 %v197
    %v240 = vpop.f32.mrb[0].mxu0
    %v241 = vadd.f32 %v204, %v240
    %v242 = vpop.f32.mrb[0].mxu0
    %v243 = vpop.f32.mrb[0].mxu0
    %v244 = vadd.f32 %v204, %v243
    %v245 = vpop.f32.mrb[0].mxu0
    %246 = vdwg.mxu0
    %v247 = vmax.f32 %v241, 0.0
    %v248 = vmax.f32 %v244, 0.0
    %v249 = vpack.c.bf16 %v248, %v247
    %v250 = vld [vmem:[%s6] sm:$0x1]
    %v252 = vlaneseq
    %v253 = vshrl.u32 %v252, 7
    %v254 = vsub.s32 0, %v253
    %v255 = vrot.slane %v250, %v254
    %257 = vmatprep.subr.bf16.mxu0 0
    %258 = vmatpush1.bf16.msra.mxu0 %v119
    %259 = vmatprep.subr.bf16.mxu0 0
    %260 = vmatpush1.bf16.msra.mxu0 %v120
    %261 = vmatprep.subr.bf16.mxu0 0
    %262 = vmatpush1.bf16.msra.mxu0 %v121
    %263 = vmatprep.subr.bf16.mxu0 0
    %264 = vmatpush1.bf16.msra.mxu0 %v122
    %265 = vmatprep.subr.bf16.mxu0 0
    %266 = vmatpush1.bf16.msra.mxu0 %v123
    %267 = vmatprep.subr.bf16.mxu0 0
    %268 = vmatpush1.bf16.msra.mxu0 %v124
    %269 = vmatprep.subr.bf16.mxu0 0
    %270 = vmatpush1.bf16.msra.mxu0 %v125
    %271 = vmatprep.subr.bf16.mxu0 0
    %272 = vmatpush1.bf16.msra.mxu0 %v126
    %273 = vmatprep.subr.bf16.mxu0 0
    %274 = vmatpush1.bf16.msra.mxu0 0
    %275 = vmatprep.subr.bf16.mxu0 0
    %276 = vmatpush1.bf16.msra.mxu0 0
    %277 = vmatprep.subr.bf16.mxu0 0
    %278 = vmatpush1.bf16.msra.mxu0 0
    %279 = vmatprep.subr.bf16.mxu0 0
    %280 = vmatpush1.bf16.msra.mxu0 0
    %281 = vmatprep.subr.bf16.mxu0 0
    %282 = vmatpush1.bf16.msra.mxu0 0
    %283 = vmatprep.subr.bf16.mxu0 0
    %284 = vmatpush1.bf16.msra.mxu0 0
    %285 = vmatprep.subr.bf16.mxu0 0
    %286 = vmatpush1.bf16.msra.mxu0 0
    %287 = vmatprep.subr.bf16.mxu0 0
    %288 = vmatpush1.bf16.msra.mxu0 0
    %289 = vmatprep.mubr.bf16.mxu0 0
    %290 = vmatmul.mubr.bf16.gmra.mrb[0].mxu0 %v249
    %v291 = vpop.f32.mrb[0].mxu0
    %v292 = vadd.f32 %v255, %v291
    %v293 = vpop.f32.mrb[0].mxu0
    %v294 = vpop.f32.mrb[0].mxu0
    %v295 = vadd.f32 %v255, %v294
    %v296 = vpop.f32.mrb[0].mxu0
    %297 = vdwg.mxu0
    %vm298 = vcmask 121856
    %299 = vst.msk [vmem:[#allocation5] sm:$0xff] %vm298, %v292
    %300 = vst.msk [vmem:[#allocation5 + $0x8] sm:$0xff] %vm298, %v295
    // Predicated region
    $region34: #{router_mlp.1} parent=1 // pred_check
      _
    $region35: #{router_mlp.1} parent=1 // pred_check_branch
      %302 = sbr.rel (0) target = $region37
    $region36: #{router_mlp.1} parent=1 // pred_region
      %s304 = ssub.s32 256, 256
      %305 = vsyncadd [#allocation4], %s304
      %s306 = sshll.u32 [#allocation5], 4
      %s307 = int_to_ptr.vmem [resolvable:$true] %s306
      %312 = dma.vmem_to_hbm [thread:$0]  %s307, 256, %s7, [#allocation4], 128, 128, 8
    $region37: #{router_mlp.1} parent=1 // pred_fallthru
      _
    // Predicated region
    $region38: #{router_mlp.1} parent=1 // pred_check
      _
    $region39: #{router_mlp.1} parent=1 // pred_check_branch
      %314 = sbr.rel (0) target = $region41
    $region40: #{router_mlp.1} parent=1 // pred_region
      %315 = dma.done [#allocation4], 256
    $region41: #{router_mlp.1} parent=1 // pred_fallthru
      _
    %316 = vsyncpa [#allocation3], 1
    %317 = vsyncpa [#allocation4], 1

</llo_original>
